<compile_context>
chip_gen: v5e
topology: v5e:2x2
jax: 0.10.0
libtpu: 0.0.40
codegen_flags: <defaults>
</compile_context>

<pallas_src>
import functools

import jax
import jax.numpy as jnp
from jax import lax
from jax.experimental import pallas as pl
from jax.experimental.pallas import tpu as pltpu


# ----------------------------------------------------------------------------
# Shared classifier tile + online log-sum-exp + lane-dense stores
# ----------------------------------------------------------------------------
def _classify_lse_store(hid, w_ref, out_ref, m_ref, l_ref, *, V_real, TB, TV, NV):
    j = pl.program_id(1)

    # (TB, E) . (TV, E)^T on the MXU, f32 accumulation.
    logits = lax.dot_general(
        hid, w_ref[...],
        dimension_numbers=(((1,), (1,)), ((), ())),
        preferred_element_type=jnp.float32)                     # (TB, TV)

    if V_real != NV * TV:   # static condition: only traced when the vocab was padded
        col = lax.broadcasted_iota(jnp.int32, (TB, TV), 1) + j * TV
        logits = jnp.where(col < V_real, logits, -1e30)

    # Raw logits go straight into the VMEM-resident (TB, v_pad) output slab.
    # Static 128-aligned column offsets (one pl.when branch per vocab tile; only
    # the branch matching j runs) keep every store lane-dense and avoid dynamic
    # lane-offset addressing.
    for jj in range(NV):
        @pl.when(j == jj)
        def _(jj=jj):
            out_ref[:, jj * TV:(jj + 1) * TV] = logits

    # Online (flash-style) log-sum-exp over the vocab axis, all in f32.
    m_prev = m_ref[...]
    m_new = jnp.maximum(m_prev, jnp.max(logits, axis=1, keepdims=True))
    l_ref[...] = (l_ref[...] * jnp.exp(m_prev - m_new)
                  + jnp.sum(jnp.exp(logits - m_new), axis=1, keepdims=True))
    m_ref[...] = m_new

    # Last vocab tile: log_softmax = logits - (m + log l), in place on the slab.
    @pl.when(j == NV - 1)
    def _():
        lse = m_ref[...] + jnp.log(l_ref[...])                  # (TB, 1)
        for jj in range(NV):                                    # static 128-aligned slices
            out_ref[:, jj * TV:(jj + 1) * TV] = out_ref[:, jj * TV:(jj + 1) * TV] - lse


# ----------------------------------------------------------------------------
# Fast path: embedding table resident in VMEM, rows gathered with dynamic loads
# ----------------------------------------------------------------------------
def _cbow_kernel_vmem_table(idx_ref, emb_ref, w_ref, out_ref,
                            hid_ref, m_ref, l_ref,
                            *, C, V_real, TB, TV, NV):
    i = pl.program_id(0)          # batch tile
    j = pl.program_id(1)          # vocab tile
    V_emb = emb_ref.shape[0]

    # ---- first vocab tile: gather context embeddings, build hidden, init LSE ----
    @pl.when(j == 0)
    def _():
        m_ref[...] = jnp.full((TB, 1), -jnp.inf, jnp.float32)
        l_ref[...] = jnp.zeros((TB, 1), jnp.float32)

        base = i * (TB * C)       # flat offset of this batch tile in the (B*C,) indices
        inv_c = jnp.float32(1.0 / C)

        def _row(r, carry):
            base_r = base + r * C

            def _ctx(c, acc):
                # PyTorch nn.Embedding would raise on OOB; clamp instead.
                row = jnp.clip(idx_ref[base_r + c], 0, V_emb - 1)
                return acc + emb_ref[pl.ds(row, 1), :]

            row0 = jnp.clip(idx_ref[base_r], 0, V_emb - 1)
            acc = emb_ref[pl.ds(row0, 1), :]                     # (1, E) f32
            acc = lax.fori_loop(1, C, _ctx, acc, unroll=True)
            hid_ref[pl.ds(r, 1), :] = acc * inv_c
            return carry

        lax.fori_loop(0, TB, _row, 0)

    hid = hid_ref[...].astype(w_ref.dtype)   # bf16 operand when weights are bf16
    _classify_lse_store(hid, w_ref, out_ref, m_ref, l_ref,
                        V_real=V_real, TB=TB, TV=TV, NV=NV)


# ----------------------------------------------------------------------------
# Fallback: huge vocab, embedding table stays in HBM, rows gathered via async DMA
# ----------------------------------------------------------------------------
def _cbow_kernel_hbm_table(idx_ref, emb_ref, w_ref, out_ref,
                           hid_ref, m_ref, l_ref, gather_buf, gather_sem,
                           *, C, V_real, TB, TV, NV):
    i = pl.program_id(0)
    j = pl.program_id(1)
    n_rows = TB * C
    V_emb = emb_ref.shape[0]

    # TODO(synk): overlap this gather with the previous batch tile's vocab sweep
    # (double-buffered gather_buf/hid + second semaphore, issue at j == NV-1).
    @pl.when(j == 0)
    def _():
        m_ref[...] = jnp.full((TB, 1), -jnp.inf, jnp.float32)
        l_ref[...] = jnp.zeros((TB, 1), jnp.float32)

        base = i * n_rows

        def _start(k, carry):
            # destination slot k = c * TB + r (context-major so the reduction below
            # uses static, sublane-aligned contiguous slices)
            r = k % TB
            c = k // TB
            row = jnp.clip(idx_ref[base + r * C + c], 0, V_emb - 1)
            pltpu.make_async_copy(
                emb_ref.at[pl.ds(row, 1)],
                gather_buf.at[pl.ds(k, 1)],
                gather_sem.at[0]).start()
            return carry

        def _wait(k, carry):
            # all gathered rows are the same size -> wait n_rows times on the shared sem
            pltpu.make_async_copy(
                emb_ref.at[pl.ds(0, 1)],
                gather_buf.at[pl.ds(0, 1)],
                gather_sem.at[0]).wait()
            return carry

        lax.fori_loop(0, n_rows, _start, 0)
        lax.fori_loop(0, n_rows, _wait, 0)

        acc = gather_buf[0:TB, :]
        for c in range(1, C):
            acc = acc + gather_buf[c * TB:(c + 1) * TB, :]
        hid_ref[...] = acc * (1.0 / C)

    hid = hid_ref[...].astype(w_ref.dtype)
    _classify_lse_store(hid, w_ref, out_ref, m_ref, l_ref,
                        V_real=V_real, TB=TB, TV=TV, NV=NV)


# ----------------------------------------------------------------------------
# Host wrapper
# ----------------------------------------------------------------------------
def cbow_forward(indices, embedding_weight, classify_weight, *,
                 block_b=128, block_v=1024,
                 weight_dtype=jnp.bfloat16,
                 emb_table_vmem_budget=24 * 1024 * 1024,
                 vmem_limit_bytes=None):
    """log_softmax((mean over context of emb[idx]) @ W^T, dim=1) — CbowModel.forward."""
    indices = jnp.asarray(indices, dtype=jnp.int32)
    emb = jnp.asarray(embedding_weight, dtype=jnp.float32)
    w = jnp.asarray(classify_weight, dtype=jnp.float32)

    B, C = indices.shape
    V, E = emb.shape
    assert w.shape == (V, E)

    # ---- tile selection ------------------------------------------------------
    # Batch tile: as big as the (8-aligned) batch allows, capped at block_b
    # (128 fills v5e's 128-wide MXU M-dim; pass block_b=256 to fill v6e/v7x).
    # Keep at least two batch tiles when the batch allows so the "parallel" grid
    # axis can span both TensorCores on v7x; costs nothing on v5e/v6e.
    b_pad8 = ((B + 7) // 8) * 8
    tb = max(8, (min(int(block_b), b_pad8) // 8) * 8)
    if b_pad8 // tb < 2 and b_pad8 >= 16:
        tb = max(8, ((b_pad8 // 2) // 8) * 8)
    b_pad = ((B + tb - 1) // tb) * tb
    nb = b_pad // tb

    # Vocab tile: lane-dense multiple of 128; 1024 keeps each streamed weight-tile
    # DMA well above the ~0.35 us per-grid-step overhead.
    tv = max(128, (int(block_v) // 128) * 128)
    v_pad = ((V + tv - 1) // tv) * tv
    nv = v_pad // tv

    # ---- host-side padding / dtype -------------------------------------------
    idx_pad = indices if b_pad == B else jnp.pad(indices, ((0, b_pad - B), (0, 0)))
    idx_flat = idx_pad.reshape(-1)                        # 1D -> compact SMEM layout
    w_pad = w if v_pad == V else jnp.pad(w, ((0, v_pad - V), (0, 0)))
    w_pad = w_pad.astype(weight_dtype)   # bf16 halves the dominant HBM weight stream

    emb_in_vmem = (V * E * 4) <= int(emb_table_vmem_budget)

    # ---- kernel / specs / scratch --------------------------------------------
    base_scratch = [
        pltpu.VMEM((tb, E), jnp.float32),   # hidden (mean of context embeddings)
        pltpu.VMEM((tb, 1), jnp.float32),   # running max
        pltpu.VMEM((tb, 1), jnp.float32),   # running sum(exp)
    ]
    if emb_in_vmem:
        kernel = functools.partial(_cbow_kernel_vmem_table,
                                   C=C, V_real=V, TB=tb, TV=tv, NV=nv)
        emb_spec = pl.BlockSpec((V, E), lambda i, j, idx: (0, 0))  # table resident in VMEM
        scratch_shapes = base_scratch
    else:
        kernel = functools.partial(_cbow_kernel_hbm_table,
                                   C=C, V_real=V, TB=tb, TV=tv, NV=nv)
        emb_spec = pl.BlockSpec(memory_space=pl.ANY)               # table stays in HBM
        scratch_shapes = base_scratch + [
            pltpu.VMEM((tb * C, E), jnp.float32),   # gathered embedding rows
            pltpu.SemaphoreType.DMA((1,)),          # shared gather semaphore
        ]

    # TODO(synk): for very large vocab on v7x (64 MiB VMEM), switch to a per-tile
    # (tb, tv) output plus a separate (tb, 1) lse output and apply `- lse` in a
    # trailing fused op, instead of the VMEM-resident (tb, v_pad) slab below.
    grid_spec = pltpu.PrefetchScalarGridSpec(
        num_scalar_prefetch=1,                               # indices -> SMEM
        grid=(nb, nv),
        in_specs=[
            emb_spec,
            pl.BlockSpec((tv, E), lambda i, j, idx: (j, 0)), # streamed classifier tile
        ],
        out_specs=pl.BlockSpec((tb, v_pad), lambda i, j, idx: (i, 0)),  # resident over j
        scratch_shapes=scratch_shapes,
    )

    # VMEM budget derived from the actual buffers (double-buffered weight tile,
    # resident output slab, table / gather buffer, small scratch) + headroom.
    wbytes = jnp.dtype(weight_dtype).itemsize
    vmem_est = (2 * tv * E * wbytes
                + 2 * tb * v_pad * 4
                + (2 * V * E * 4 if emb_in_vmem else tb * C * E * 4)
                + tb * E * 4 + 2 * tb * 128 * 4)
    if vmem_limit_bytes is None:
        vmem_limit_bytes = min(max(int(1.25 * vmem_est) + (4 << 20), 16 << 20), 96 << 20)

    out = pl.pallas_call(
        kernel,
        out_shape=jax.ShapeDtypeStruct((b_pad, v_pad), jnp.float32),
        grid_spec=grid_spec,
        compiler_params=pltpu.CompilerParams(
            dimension_semantics=("parallel", "arbitrary"),
            vmem_limit_bytes=int(vmem_limit_bytes)),
    )(idx_flat, emb, w_pad)

    return out[:B, :V]


def cbow_reference(indices, embedding_weight, classify_weight):
    embed = embedding_weight[indices]                 # (B, C, E)
    hidden = embed.mean(axis=1)                       # (B, E)
    output = hidden @ classify_weight.T               # (B, V), bias=False
    return jax.nn.log_softmax(output, axis=1)


if __name__ == "__main__":
    vocab_size = 2048
    embedding_dim = 128
    batch = 16
    context = 8

    key = jax.random.PRNGKey(0)
    k_emb, k_lin, k_idx = jax.random.split(key, 3)

    # nn.Embedding default init: N(0, 1); nn.Linear default: U(-1/sqrt(E), 1/sqrt(E))
    embedding_weight = jax.random.normal(k_emb, (vocab_size, embedding_dim),
                                         dtype=jnp.float32)
    bound = 1.0 / (embedding_dim ** 0.5)
    classify_weight = jax.random.uniform(k_lin, (vocab_size, embedding_dim),
                                         minval=-bound, maxval=bound,
                                         dtype=jnp.float32)
    indices = jax.random.randint(k_idx, (batch, context), 0, vocab_size,
                                 dtype=jnp.int32)

    ref = cbow_reference(indices, embedding_weight, classify_weight)

    # 1) exact-precision path (f32 weights, VMEM-resident table): matches PyTorch math
    logit_f32 = cbow_forward(indices, embedding_weight, classify_weight,
                             weight_dtype=jnp.float32)
    logit_f32 = jax.block_until_ready(logit_f32)
    assert logit_f32.shape == (batch, vocab_size)
    assert jnp.allclose(logit_f32, ref, atol=1e-4, rtol=1e-4), \
        float(jnp.max(jnp.abs(logit_f32 - ref)))

    # 2) huge-vocab fallback path (table forced to HBM, DMA row gather), still f32-exact
    logit_hbm = cbow_forward(indices, embedding_weight, classify_weight,
                             weight_dtype=jnp.float32, emb_table_vmem_budget=0)
    logit_hbm = jax.block_until_ready(logit_hbm)
    assert jnp.allclose(logit_hbm, ref, atol=1e-4, rtol=1e-4), \
        float(jnp.max(jnp.abs(logit_hbm - ref)))

    # 3) default fast path: bf16 classifier stream, f32 MXU accumulation + f32 LSE
    logit_bf16 = cbow_forward(indices, embedding_weight, classify_weight)
    logit_bf16 = jax.block_until_ready(logit_bf16)
    assert jnp.allclose(logit_bf16, ref, atol=2e-2, rtol=2e-2), \
        float(jnp.max(jnp.abs(logit_bf16 - ref)))

    print("KERNEL_OK")
</pallas_src>

<mosaic_0001>
module attributes {stable_mosaic.version = 11 : i64} {
  func.func @_cbow_kernel_vmem_table(%arg0: i32, %arg1: i32, %arg2: memref<128xi32, #tpu.memory_space<smem>>, %arg3: memref<2048x128xf32, #tpu.memory_space<vmem>>, %arg4: memref<1024x128xf32, #tpu.memory_space<vmem>>, %arg5: memref<8x2048xf32, #tpu.memory_space<vmem>>, %arg6: memref<8x128xf32, #tpu.memory_space<vmem>>, %arg7: memref<8x1xf32, #tpu.memory_space<vmem>>, %arg8: memref<8x1xf32, #tpu.memory_space<vmem>>) attributes {dimension_semantics = [#tpu.dimension_semantics<parallel>, #tpu.dimension_semantics<arbitrary>], iteration_bounds = array<i64: 2, 2>, scalar_prefetch = 1 : i64, scratch_operands = 3 : i64, tpu.core_type = #tpu.core_type<tc>, window_params = [{pipeline_mode = #tpu.pipeline_mode<synchronous>, transform_indices = @transform_0, window_bounds = array<i64: 2048, 128>}, {transform_indices = @transform_1, window_bounds = array<i64: 1024, 128>}, {transform_indices = @transform_2, window_bounds = array<i64: 8, 2048>}]} {
    %c0_i32 = arith.constant 0 : i32
    %0 = arith.cmpi eq, %arg1, %c0_i32 : i32
    %1 = arith.extui %0 : i1 to i32
    %c0_i32_0 = arith.constant 0 : i32
    %2 = arith.cmpi ne, %1, %c0_i32_0 : i32
    scf.if %2 {
      %cst_19 = arith.constant 0xFF800000 : f32
      %31 = vector.broadcast %cst_19 : f32 to vector<8x1xf32>
      %c0_20 = arith.constant 0 : index
      %c0_21 = arith.constant 0 : index
      %32 = vector.load %arg7[%c0_20, %c0_21] : memref<8x1xf32, #tpu.memory_space<vmem>>, vector<8x1xf32>
      tpu.vector_store %arg7[%c0_20, %c0_21], %31 {strides = array<i32>} : memref<8x1xf32, #tpu.memory_space<vmem>>, vector<8x1xf32>,
      %cst_22 = arith.constant 0.000000e+00 : f32
      %33 = vector.broadcast %cst_22 : f32 to vector<8x1xf32>
      %c0_23 = arith.constant 0 : index
      %c0_24 = arith.constant 0 : index
      %34 = vector.load %arg8[%c0_23, %c0_24] : memref<8x1xf32, #tpu.memory_space<vmem>>, vector<8x1xf32>
      tpu.vector_store %arg8[%c0_23, %c0_24], %33 {strides = array<i32>} : memref<8x1xf32, #tpu.memory_space<vmem>>, vector<8x1xf32>,
      %c64_i32 = arith.constant 64 : i32
      %35 = arith.muli %arg0, %c64_i32 : i32
      %cst_25 = arith.constant 1.250000e-01 : f32
      %c0_i32_26 = arith.constant 0 : i32
      %c8_i32 = arith.constant 8 : i32
      %36 = arith.addi %c0_i32_26, %c8_i32 : i32
      %c1_i32_27 = arith.constant 1 : i32
      scf.for %arg9 = %c0_i32_26 to %36 step %c1_i32_27  : i32 {
        %c8_i32_29 = arith.constant 8 : i32
        %37 = arith.muli %arg9, %c8_i32_29 : i32
        %38 = arith.addi %35, %37 : i32
        %39 = arith.index_cast %38 : i32 to index
        %40 = memref.load %arg2[%39] : memref<128xi32, #tpu.memory_space<smem>>
        %c0_i32_30 = arith.constant 0 : i32
        %c2047_i32 = arith.constant 2047 : i32
        %41 = arith.maxsi %c0_i32_30, %40 : i32
        %42 = arith.minsi %c2047_i32, %41 : i32
        %43 = arith.index_cast %42 : i32 to index
        %c0_31 = arith.constant 0 : index
        %44 = vector.load %arg3[%43, %c0_31] : memref<2048x128xf32, #tpu.memory_space<vmem>>, vector<1x128xf32>
        %c1_i32_32 = arith.constant 1 : i32
        %45 = arith.addi %38, %c1_i32_32 : i32
        %46 = arith.index_cast %45 : i32 to index
        %47 = memref.load %arg2[%46] : memref<128xi32, #tpu.memory_space<smem>>
        %c0_i32_33 = arith.constant 0 : i32
        %c2047_i32_34 = arith.constant 2047 : i32
        %48 = arith.maxsi %c0_i32_33, %47 : i32
        %49 = arith.minsi %c2047_i32_34, %48 : i32
        %50 = arith.index_cast %49 : i32 to index
        %c0_35 = arith.constant 0 : index
        %51 = vector.load %arg3[%50, %c0_35] : memref<2048x128xf32, #tpu.memory_space<vmem>>, vector<1x128xf32>
        %52 = arith.addf %44, %51 : vector<1x128xf32>
        %c2_i32 = arith.constant 2 : i32
        %53 = arith.addi %38, %c2_i32 : i32
        %54 = arith.index_cast %53 : i32 to index
        %55 = memref.load %arg2[%54] : memref<128xi32, #tpu.memory_space<smem>>
        %c0_i32_36 = arith.constant 0 : i32
        %c2047_i32_37 = arith.constant 2047 : i32
        %56 = arith.maxsi %c0_i32_36, %55 : i32
        %57 = arith.minsi %c2047_i32_37, %56 : i32
        %58 = arith.index_cast %57 : i32 to index
        %c0_38 = arith.constant 0 : index
        %59 = vector.load %arg3[%58, %c0_38] : memref<2048x128xf32, #tpu.memory_space<vmem>>, vector<1x128xf32>
        %60 = arith.addf %52, %59 : vector<1x128xf32>
        %c3_i32 = arith.constant 3 : i32
        %61 = arith.addi %38, %c3_i32 : i32
        %62 = arith.index_cast %61 : i32 to index
        %63 = memref.load %arg2[%62] : memref<128xi32, #tpu.memory_space<smem>>
        %c0_i32_39 = arith.constant 0 : i32
        %c2047_i32_40 = arith.constant 2047 : i32
        %64 = arith.maxsi %c0_i32_39, %63 : i32
        %65 = arith.minsi %c2047_i32_40, %64 : i32
        %66 = arith.index_cast %65 : i32 to index
        %c0_41 = arith.constant 0 : index
        %67 = vector.load %arg3[%66, %c0_41] : memref<2048x128xf32, #tpu.memory_space<vmem>>, vector<1x128xf32>
        %68 = arith.addf %60, %67 : vector<1x128xf32>
        %c4_i32 = arith.constant 4 : i32
        %69 = arith.addi %38, %c4_i32 : i32
        %70 = arith.index_cast %69 : i32 to index
        %71 = memref.load %arg2[%70] : memref<128xi32, #tpu.memory_space<smem>>
        %c0_i32_42 = arith.constant 0 : i32
        %c2047_i32_43 = arith.constant 2047 : i32
        %72 = arith.maxsi %c0_i32_42, %71 : i32
        %73 = arith.minsi %c2047_i32_43, %72 : i32
        %74 = arith.index_cast %73 : i32 to index
        %c0_44 = arith.constant 0 : index
        %75 = vector.load %arg3[%74, %c0_44] : memref<2048x128xf32, #tpu.memory_space<vmem>>, vector<1x128xf32>
        %76 = arith.addf %68, %75 : vector<1x128xf32>
        %c5_i32 = arith.constant 5 : i32
        %77 = arith.addi %38, %c5_i32 : i32
        %78 = arith.index_cast %77 : i32 to index
        %79 = memref.load %arg2[%78] : memref<128xi32, #tpu.memory_space<smem>>
        %c0_i32_45 = arith.constant 0 : i32
        %c2047_i32_46 = arith.constant 2047 : i32
        %80 = arith.maxsi %c0_i32_45, %79 : i32
        %81 = arith.minsi %c2047_i32_46, %80 : i32
        %82 = arith.index_cast %81 : i32 to index
        %c0_47 = arith.constant 0 : index
        %83 = vector.load %arg3[%82, %c0_47] : memref<2048x128xf32, #tpu.memory_space<vmem>>, vector<1x128xf32>
        %84 = arith.addf %76, %83 : vector<1x128xf32>
        %c6_i32 = arith.constant 6 : i32
        %85 = arith.addi %38, %c6_i32 : i32
        %86 = arith.index_cast %85 : i32 to index
        %87 = memref.load %arg2[%86] : memref<128xi32, #tpu.memory_space<smem>>
        %c0_i32_48 = arith.constant 0 : i32
        %c2047_i32_49 = arith.constant 2047 : i32
        %88 = arith.maxsi %c0_i32_48, %87 : i32
        %89 = arith.minsi %c2047_i32_49, %88 : i32
        %90 = arith.index_cast %89 : i32 to index
        %c0_50 = arith.constant 0 : index
        %91 = vector.load %arg3[%90, %c0_50] : memref<2048x128xf32, #tpu.memory_space<vmem>>, vector<1x128xf32>
        %92 = arith.addf %84, %91 : vector<1x128xf32>
        %c7_i32 = arith.constant 7 : i32
        %93 = arith.addi %38, %c7_i32 : i32
        %94 = arith.index_cast %93 : i32 to index
        %95 = memref.load %arg2[%94] : memref<128xi32, #tpu.memory_space<smem>>
        %c0_i32_51 = arith.constant 0 : i32
        %c2047_i32_52 = arith.constant 2047 : i32
        %96 = arith.maxsi %c0_i32_51, %95 : i32
        %97 = arith.minsi %c2047_i32_52, %96 : i32
        %98 = arith.index_cast %97 : i32 to index
        %c0_53 = arith.constant 0 : index
        %99 = vector.load %arg3[%98, %c0_53] : memref<2048x128xf32, #tpu.memory_space<vmem>>, vector<1x128xf32>
        %100 = arith.addf %92, %99 : vector<1x128xf32>
        %c7_i32_54 = arith.constant 7 : i32
        %101 = vector.broadcast %cst_25 : f32 to vector<1x128xf32>
        %102 = arith.mulf %100, %101 : vector<1x128xf32>
        %103 = arith.index_cast %arg9 : i32 to index
        %c0_55 = arith.constant 0 : index
        %104 = vector.load %arg6[%103, %c0_55] : memref<8x128xf32, #tpu.memory_space<vmem>>, vector<1x128xf32>
        tpu.vector_store %arg6[%103, %c0_55], %102 {strides = array<i32>} : memref<8x128xf32, #tpu.memory_space<vmem>>, vector<1x128xf32>,
      }
      %c8_i32_28 = arith.constant 8 : i32
    } else {
    }
    %c0 = arith.constant 0 : index
    %c0_1 = arith.constant 0 : index
    %3 = vector.load %arg6[%c0, %c0_1] : memref<8x128xf32, #tpu.memory_space<vmem>>, vector<8x128xf32>
    %c0_2 = arith.constant 0 : index
    %c0_3 = arith.constant 0 : index
    %4 = vector.load %arg4[%c0_2, %c0_3] : memref<1024x128xf32, #tpu.memory_space<vmem>>, vector<1024x128xf32>
    %cst = arith.constant dense<0.000000e+00> : vector<8x1024xf32>
    %5 = tpu.matmul %3, %4, %cst {dimension_numbers = #tpu.dot_dimension_numbers<[1], [1], [0], [0], [0, 0, 1, 0], [], []>} : vector<8x128xf32>, vector<1024x128xf32>, vector<8x1024xf32> -> vector<8x1024xf32>
    %c0_i32_4 = arith.constant 0 : i32
    %6 = arith.cmpi eq, %arg1, %c0_i32_4 : i32
    %7 = arith.extui %6 : i1 to i32
    %c0_i32_5 = arith.constant 0 : i32
    %8 = arith.cmpi ne, %7, %c0_i32_5 : i32
    scf.if %8 {
      %c0_19 = arith.constant 0 : index
      %c0_20 = arith.constant 0 : index
      %31 = vector.load %arg5[%c0_19, %c0_20] : memref<8x2048xf32, #tpu.memory_space<vmem>>, vector<8x1024xf32>
      tpu.vector_store %arg5[%c0_19, %c0_20], %5 {strides = array<i32>} : memref<8x2048xf32, #tpu.memory_space<vmem>>, vector<8x1024xf32>,
    } else {
    }
    %c1_i32 = arith.constant 1 : i32
    %9 = arith.cmpi eq, %arg1, %c1_i32 : i32
    %10 = arith.extui %9 : i1 to i32
    %c0_i32_6 = arith.constant 0 : i32
    %11 = arith.cmpi ne, %10, %c0_i32_6 : i32
    scf.if %11 {
      %c0_19 = arith.constant 0 : index
      %c1024 = arith.constant 1024 : index
      %31 = vector.load %arg5[%c0_19, %c1024] : memref<8x2048xf32, #tpu.memory_space<vmem>>, vector<8x1024xf32>
      tpu.vector_store %arg5[%c0_19, %c1024], %5 {strides = array<i32>} : memref<8x2048xf32, #tpu.memory_space<vmem>>, vector<8x1024xf32>,
    } else {
    }
    %c0_7 = arith.constant 0 : index
    %c0_8 = arith.constant 0 : index
    %12 = vector.load %arg7[%c0_7, %c0_8] : memref<8x1xf32, #tpu.memory_space<vmem>>, vector<8x1xf32>
    %cst_9 = arith.constant dense<0xFF800000> : vector<8xf32>
    %13 = vector.multi_reduction <maximumf>, %5, %cst_9 [1] : vector<8x1024xf32> to vector<8xf32>
    %14 = vector.shape_cast %13 : vector<8xf32> to vector<8x1xf32>
    %15 = arith.maximumf %12, %14 : vector<8x1xf32>
    %c0_10 = arith.constant 0 : index
    %c0_11 = arith.constant 0 : index
    %16 = vector.load %arg8[%c0_10, %c0_11] : memref<8x1xf32, #tpu.memory_space<vmem>>, vector<8x1xf32>
    %17 = arith.subf %12, %15 : vector<8x1xf32>
    %18 = math.exp %17 : vector<8x1xf32>
    %19 = arith.mulf %16, %18 : vector<8x1xf32>
    %20 = vector.broadcast %15 : vector<8x1xf32> to vector<8x1024xf32>
    %21 = arith.subf %5, %20 : vector<8x1024xf32>
    %22 = math.exp %21 : vector<8x1024xf32>
    %cst_12 = arith.constant dense<0.000000e+00> : vector<8xf32>
    %23 = vector.multi_reduction <add>, %22, %cst_12 [1] : vector<8x1024xf32> to vector<8xf32>
    %24 = vector.shape_cast %23 : vector<8xf32> to vector<8x1xf32>
    %25 = arith.addf %19, %24 : vector<8x1xf32>
    %c0_13 = arith.constant 0 : index
    %c0_14 = arith.constant 0 : index
    %26 = vector.load %arg8[%c0_13, %c0_14] : memref<8x1xf32, #tpu.memory_space<vmem>>, vector<8x1xf32>
    tpu.vector_store %arg8[%c0_13, %c0_14], %25 {strides = array<i32>} : memref<8x1xf32, #tpu.memory_space<vmem>>, vector<8x1xf32>,
    %c0_15 = arith.constant 0 : index
    %c0_16 = arith.constant 0 : index
    %27 = vector.load %arg7[%c0_15, %c0_16] : memref<8x1xf32, #tpu.memory_space<vmem>>, vector<8x1xf32>
    tpu.vector_store %arg7[%c0_15, %c0_16], %15 {strides = array<i32>} : memref<8x1xf32, #tpu.memory_space<vmem>>, vector<8x1xf32>,
    %c1_i32_17 = arith.constant 1 : i32
    %28 = arith.cmpi eq, %arg1, %c1_i32_17 : i32
    %29 = arith.extui %28 : i1 to i32
    %c0_i32_18 = arith.constant 0 : i32
    %30 = arith.cmpi ne, %29, %c0_i32_18 : i32
    scf.if %30 {
      %c0_19 = arith.constant 0 : index
      %c0_20 = arith.constant 0 : index
      %31 = vector.load %arg7[%c0_19, %c0_20] : memref<8x1xf32, #tpu.memory_space<vmem>>, vector<8x1xf32>
      %c0_21 = arith.constant 0 : index
      %c0_22 = arith.constant 0 : index
      %32 = vector.load %arg8[%c0_21, %c0_22] : memref<8x1xf32, #tpu.memory_space<vmem>>, vector<8x1xf32>
      %33 = math.log %32 : vector<8x1xf32>
      %34 = arith.addf %31, %33 : vector<8x1xf32>
      %c0_23 = arith.constant 0 : index
      %c0_24 = arith.constant 0 : index
      %35 = vector.load %arg5[%c0_23, %c0_24] : memref<8x2048xf32, #tpu.memory_space<vmem>>, vector<8x1024xf32>
      %36 = vector.broadcast %34 : vector<8x1xf32> to vector<8x1024xf32>
      %37 = arith.subf %35, %36 : vector<8x1024xf32>
      %c0_25 = arith.constant 0 : index
      %c0_26 = arith.constant 0 : index
      %38 = vector.load %arg5[%c0_25, %c0_26] : memref<8x2048xf32, #tpu.memory_space<vmem>>, vector<8x1024xf32>
      tpu.vector_store %arg5[%c0_25, %c0_26], %37 {strides = array<i32>} : memref<8x2048xf32, #tpu.memory_space<vmem>>, vector<8x1024xf32>,
      %c0_27 = arith.constant 0 : index
      %c1024 = arith.constant 1024 : index
      %39 = vector.load %arg5[%c0_27, %c1024] : memref<8x2048xf32, #tpu.memory_space<vmem>>, vector<8x1024xf32>
      %40 = vector.broadcast %34 : vector<8x1xf32> to vector<8x1024xf32>
      %41 = arith.subf %39, %40 : vector<8x1024xf32>
      %c0_28 = arith.constant 0 : index
      %c1024_29 = arith.constant 1024 : index
      %42 = vector.load %arg5[%c0_28, %c1024_29] : memref<8x2048xf32, #tpu.memory_space<vmem>>, vector<8x1024xf32>
      tpu.vector_store %arg5[%c0_28, %c1024_29], %41 {strides = array<i32>} : memref<8x2048xf32, #tpu.memory_space<vmem>>, vector<8x1024xf32>,
    } else {
    }
    return
  }
  func.func @transform_0(%arg0: i32, %arg1: i32, %arg2: memref<128xi32, #tpu.memory_space<smem>>) -> (i32, i32) {
    %c0_i32 = arith.constant 0 : i32
    %c0_i32_0 = arith.constant 0 : i32
    %c0_i32_1 = arith.constant 0 : i32
    return %c0_i32, %c0_i32_0 : i32, i32
  }
  func.func @transform_1(%arg0: i32, %arg1: i32, %arg2: memref<128xi32, #tpu.memory_space<smem>>) -> (i32, i32) {
    %c0_i32 = arith.constant 0 : i32
    %c0_i32_0 = arith.constant 0 : i32
    return %arg1, %c0_i32 : i32, i32
  }
  func.func @transform_2(%arg0: i32, %arg1: i32, %arg2: memref<128xi32, #tpu.memory_space<smem>>) -> (i32, i32) {
    %c0_i32 = arith.constant 0 : i32
    %c0_i32_0 = arith.constant 0 : i32
    return %arg0, %c0_i32 : i32, i32
  }
}

</mosaic_0001>

<llo_original>
// kernel: tpu_custom_call.1
$region0: #{tpu_custom_call.1}
  #allocation0 [shape = 'u32[]', space=smem, size = 0x4, offset = 0x4, fixed_abs, tag = 'smem constant byte address 0x4 - core index']
  #allocation1 [shape = 'u32[72,128]{1,0:T(1,128)}', space=vmem, size = 0x9000, scoped, tag = 'internal scratch']
  #allocation2 [shape = 'f32[8,128]{1,0:T(8,128)}', space=vmem, size = 0x1000, scoped, tag = 'scratch operand']
  #allocation3 [shape = 'f32[8,1]{1,0:T(8,128)}', space=vmem, size = 0x1000, scoped, tag = 'scratch operand']
  #allocation4 [shape = 'f32[8,1]{1,0:T(8,128)}', space=vmem, size = 0x1000, scoped, tag = 'scratch operand']
  #allocation5 [shape = 's32[1]{0}', space=sflag, size = 0x4, scoped, tag = 'scoped memory for tpu_custom_call.1']
  #allocation6 [shape = 'u8[512]{0}', space=smem, size = 0x200, scoped, tag = 'prefetched SMEM operand 0']
  %s0 = inlined_call_operand.hbm [shape: s32[128], index: 0, kind: input, shape index: {}]
  %s1 = inlined_call_operand.hbm [shape: f32[2048,128], index: 1, kind: input, shape index: {}]
  %s2 = inlined_call_operand.hbm [shape: f32[2048,128], index: 2, kind: input, shape index: {}]
  %s3 = inlined_call_operand.hbm [shape: f32[16,2048], index: 3, kind: output, shape index: {}]
  %s4 = sld [smem:[#allocation0]]
  $region72: #{tpu_custom_call.1} parent=0
    _
  %s6 = ssub.s32 1, %s4
  %s7 = scalar_select 0, %s6, %s4
  %s9 = sshll.u32 %s0, 4
  %s10 = int_to_ptr.hbm [resolvable:$true] %s9
  %12 = dma.hbm_to_smem %s10, 16, [#allocation6], [#allocation5]
  %14 = dma.done [#allocation5], 16
  %15 = sfence
  $region1: #{tpu_custom_call.1} parent=0
    #allocation7 [shape = 'u8[1048576]{0}', space=vmem, size = 0x100000, scoped, tag = 'input window, operand 1, single buffered']
    #allocation8 [shape = 's32[2]{0}', space=sflag, size = 0x8, scoped, tag = 'scoped memory for tpu_custom_call.1']
    #allocation9 [shape = 's32[2]{0}', space=sflag, size = 0x8, scoped, tag = 'scoped memory for tpu_custom_call.1']
    #allocation10 [shape = 'u8[1048576]{0}', space=vmem, size = 0x100000, scoped, tag = 'input window, operand 2']
    #allocation11 [shape = 's32[2]{0}', space=sflag, size = 0x8, scoped, tag = 'scoped memory for tpu_custom_call.1']
    #allocation12 [shape = 'u8[131072]{0}', space=vmem, size = 0x20000, scoped, tag = 'output window, operand 0']
    %16 = vsyncpa [#allocation8], 0
    %17 = vsyncpa [#allocation11], 0
    %s18 = scalar_lea.sflag [#allocation11], 1
    %19 = vsyncpa %s18, 0
    %20 = vsyncpa [#allocation9], 0
    %s21 = scalar_lea.sflag [#allocation9], 1
    %22 = vsyncpa %s21, 0
    loop: start=0, step=1, limit=6
    $region2: #{tpu_custom_call.1} parent=1 // loop_pre_header
      _
    $region3: #{tpu_custom_call.1} parent=1 // loop_header
      %s24 = sphi 0, %s28
      %p25 = scmp.ge.s32.totalorder %s24, 6
      %s31 = sphi 0, %s43
      %s32 = sphi 0, %s39
      %s33 = sphi 0, %s31
      %s34 = sphi 0, %s32
      %s35 = sphi 0, %s33
      %s36 = sphi 0, %s34
      %s44 = sphi 0, %s44
      %s46 = sphi 0, %s44
      %s47 = sphi 0, %s46
      %s61 = sphi 0, %s47
      %s67 = sphi 0, %s69
      %s70 = sphi 0, %s67
      %s71 = sphi 0, %s70
      %s87 = sphi 0, %s71
      %s93 = sphi 0, %s95
      %s96 = sphi 0, %s93
      %s97 = sphi 0, %s96
      %s113 = sphi 0, %s97
    $region4: #{tpu_custom_call.1} parent=1 // loop_header_branch
      %27 = sbr.rel (%p25) target = $region8
    $region5: #{tpu_custom_call.1} parent=1 // loop_body
      %s29 = ssub.s32 %s24, 1
      %s30 = ssub.s32 %s24, 2
      %s37 = sadd.s32 1, %s32
      %p38 = scmp.ge.s32.totalorder %s37, 2
      %s39 = scalar_select %p38, 0, %s37
      %s40 = sadd.s32 1, %s31
      %s41 = scalar_select %p38, %s40, %s31
      %p42 = scmp.ge.s32.totalorder %s41, 2
      %s43 = scalar_select %p42, 0, %s41
      %s45 = sadd.s32 %s44, 1
      %p48 = scmp.eq.s32.totalorder %s24, 3
      %p49 = scmp.ne.s32.totalorder %s44, %s46
      %p50 = scmp.eq.s32.totalorder %s24, 0
      %p51 = por %p49, %p50
      %p52 = scmp.ne.s32.totalorder %s44, %s46
      %p53 = scmp.eq.s32.totalorder %s29, 3
      %p54 = por %p52, %p53
      %p55 = scmp.ne.s32.totalorder %s46, %s47
      %p56 = scmp.eq.s32.totalorder %s29, 0
      %p57 = por %p55, %p56
      %p58 = scmp.ne.s32.totalorder %s46, %s47
      %p59 = scmp.eq.s32.totalorder %s30, 3
      %p60 = por %p58, %p59
      %p62 = scmp.ne.s32.totalorder %s47, %s61
      %p63 = scmp.eq.s32.totalorder %s30, 0
      %p64 = por %p62, %p63
      %s65 = ssub.s32 %s32, %s39
      %p66 = scmp.eq.s32.totalorder %s65, 0
      %s68 = sadd.s32 %s67, 1
      %s69 = scalar_select %p66, %s67, %s68
      %p72 = pneg %p66
      %p73 = scmp.eq.s32.totalorder %s24, 3
      %p74 = por %p72, %p73
      %p75 = scmp.ne.s32.totalorder %s67, %s70
      %p76 = scmp.eq.s32.totalorder %s24, 0
      %p77 = por %p75, %p76
      %p78 = scmp.ne.s32.totalorder %s67, %s70
      %p79 = scmp.eq.s32.totalorder %s29, 3
      %p80 = por %p78, %p79
      %p81 = scmp.ne.s32.totalorder %s70, %s71
      %p82 = scmp.eq.s32.totalorder %s29, 0
      %p83 = por %p81, %p82
      %p84 = scmp.ne.s32.totalorder %s70, %s71
      %p85 = scmp.eq.s32.totalorder %s30, 3
      %p86 = por %p84, %p85
      %p88 = scmp.ne.s32.totalorder %s71, %s87
      %p89 = scmp.eq.s32.totalorder %s30, 0
      %p90 = por %p88, %p89
      %s91 = ssub.s32 %s31, %s43
      %p92 = scmp.eq.s32.totalorder %s91, 0
      %s94 = sadd.s32 %s93, 1
      %s95 = scalar_select %p92, %s93, %s94
      %p98 = pneg %p92
      %p99 = scmp.eq.s32.totalorder %s24, 3
      %p100 = por %p98, %p99
      %p101 = scmp.ne.s32.totalorder %s93, %s96
      %p102 = scmp.eq.s32.totalorder %s24, 0
      %p103 = por %p101, %p102
      %p104 = scmp.ne.s32.totalorder %s93, %s96
      %p105 = scmp.eq.s32.totalorder %s29, 3
      %p106 = por %p104, %p105
      %p107 = scmp.ne.s32.totalorder %s96, %s97
      %p108 = scmp.eq.s32.totalorder %s29, 0
      %p109 = por %p107, %p108
      %p110 = scmp.ne.s32.totalorder %s96, %s97
      %p111 = scmp.eq.s32.totalorder %s30, 3
      %p112 = por %p110, %p111
      %p114 = scmp.ne.s32.totalorder %s97, %s113
      %p115 = scmp.eq.s32.totalorder %s30, 0
      %p116 = por %p114, %p115
      %p117 = scmp.le.s32.totalorder 1, %s24
      %p118 = scmp.lt.s32.totalorder %s24, 5
      %p119 = pnand %p117, %p118
      %p120 = pneg %p119
      // Predicated region
      $region9: #{tpu_custom_call.1} parent=5 // pred_check
        _
      $region10: #{tpu_custom_call.1} parent=5 // pred_check_branch
        %122 = sbr.rel (%p119) target = $region12
      $region11: #{tpu_custom_call.1} parent=5 // pred_region
        %s123 = ssub.s32 %s24, 1
        // Predicated region
        $region13: #{tpu_custom_call.1} parent=11 // pred_check
          %p124 = pneg %p57
        $region14: #{tpu_custom_call.1} parent=11 // pred_check_branch
          %126 = sbr.rel (%p124) target = $region16
        $region15: #{tpu_custom_call.1} parent=11 // pred_region
          %128 = vsyncadd [#allocation8], 0
          %s129 = sshll.u32 %s1, 4
          %s130 = int_to_ptr.hbm [resolvable:$true] %s129
          %s131 = sshll.u32 [#allocation7], 4
          %s132 = int_to_ptr.vmem [resolvable:$true] %s131
          %137 = dma.hbm_to_vmem [thread:$0]  %s130, 32768, %s132, [#allocation8], 128, 128, 8
        $region16: #{tpu_custom_call.1} parent=11 // pred_fallthru
          _
      $region12: #{tpu_custom_call.1} parent=5 // pred_fallthru
        _
      %p138 = scmp.lt.s32.totalorder %s24, 4
      // Predicated region
      $region17: #{tpu_custom_call.1} parent=5 // pred_check
        %p139 = pneg %p138
      $region18: #{tpu_custom_call.1} parent=5 // pred_check_branch
        %141 = sbr.rel (%p139) target = $region20
      $region19: #{tpu_custom_call.1} parent=5 // pred_region
        // Predicated region
        $region21: #{tpu_custom_call.1} parent=19 // pred_check
          %p142 = pneg %p77
        $region22: #{tpu_custom_call.1} parent=19 // pred_check_branch
          %144 = sbr.rel (%p142) target = $region24
        $region23: #{tpu_custom_call.1} parent=19 // pred_region
          %s145 = sand.u32 %s67, 1
          %s146 = scalar_lea.sflag [#allocation11], %s145
          %s147 = sand.u32 %s67, 1
          %s148 = smul.addr %s147, 1024
          %s149 = scalar_lea.vmem [#allocation10], %s148
          %s150 = smul.u32 128, %s32
          %152 = vsyncadd %s146, 0
          %s153 = smul.addr %s150, 8
          %s154 = scalar_lea.hbm %s2, %s153
          %s155 = sshll.u32 %s154, 4
          %s156 = int_to_ptr.hbm [resolvable:$true] %s155
          %s157 = sshll.u32 %s149, 4
          %s158 = int_to_ptr.vmem [resolvable:$true] %s157
          %163 = dma.hbm_to_vmem [thread:$0]  %s156, 16384, %s158, %s146, 128, 128, 8
        $region24: #{tpu_custom_call.1} parent=19 // pred_fallthru
          _
      $region20: #{tpu_custom_call.1} parent=5 // pred_fallthru
        _
      %p164 = scmp.le.s32.totalorder 1, %s24
      %p165 = scmp.lt.s32.totalorder %s24, 5
      %p166 = pnand %p164, %p165
      %p167 = pneg %p166
      // Predicated region
      $region25: #{tpu_custom_call.1} parent=5 // pred_check
        _
      $region26: #{tpu_custom_call.1} parent=5 // pred_check_branch
        %169 = sbr.rel (%p166) target = $region28
      $region27: #{tpu_custom_call.1} parent=5 // pred_region
        %s170 = ssub.s32 %s24, 1
        // Predicated region
        $region29: #{tpu_custom_call.1} parent=27 // pred_check
          %p171 = pneg %p57
        $region30: #{tpu_custom_call.1} parent=27 // pred_check_branch
          %173 = sbr.rel (%p171) target = $region32
        $region31: #{tpu_custom_call.1} parent=27 // pred_region
          %175 = dma.done [#allocation8], 32768
        $region32: #{tpu_custom_call.1} parent=27 // pred_fallthru
          _
        %s176 = sand.u32 %s70, 1
        %s177 = scalar_lea.sflag [#allocation11], %s176
        %s178 = sand.u32 %s70, 1
        %s179 = smul.addr %s178, 1024
        %s180 = scalar_lea.vmem [#allocation10], %s179
        // Predicated region
        $region33: #{tpu_custom_call.1} parent=27 // pred_check
          %p181 = pneg %p83
        $region34: #{tpu_custom_call.1} parent=27 // pred_check_branch
          %183 = sbr.rel (%p181) target = $region36
        $region35: #{tpu_custom_call.1} parent=27 // pred_region
          %185 = dma.done %s177, 16384
        $region36: #{tpu_custom_call.1} parent=27 // pred_fallthru
          _
        %p186 = pneg %p57
        %p187 = pneg %p54
        %s188 = sand.u32 %s70, 1
        %s189 = scalar_lea.sflag [#allocation11], %s188
        %s190 = sand.u32 %s70, 1
        %s191 = smul.addr %s190, 1024
        %s192 = scalar_lea.vmem [#allocation10], %s191
        %p193 = pneg %p83
        %p194 = pneg %p80
        %p195 = pneg %p109
        %p196 = pneg %p106
        %s197 = sand.u32 %s96, 1
        %s198 = scalar_lea.sflag [#allocation9], %s197
        %s199 = sand.u32 %s96, 1
        %s200 = smul.addr %s199, 128
        %s201 = scalar_lea.vmem [#allocation12], %s200
        %s202 = smul.u32 128, %s34
        %p203 = scmp.eq.s32.totalorder %s34, 0
        // Predicated region
        $region37: #{tpu_custom_call.1} parent=27 // pred_check
          %p204 = pneg %p203
        $region38: #{tpu_custom_call.1} parent=27 // pred_check_branch
          %206 = sbr.rel (%p204) target = $region40
        $region39: #{tpu_custom_call.1} parent=27 // pred_region
          %vm207 = vcmask 7168
          %208 = vst.msk [vmem:[#allocation3] sm:$0xff] %vm207, -inf
          %209 = vst.msk [vmem:[#allocation4] sm:$0xff] %vm207, 0.0
          %s210 = smul.u32 %s33, 64
          loop: start=0, step=1, limit=8
          $region41: #{tpu_custom_call.1} parent=39 // loop_pre_header
            _
          $region42: #{tpu_custom_call.1} parent=39 // loop_header
            %s212 = sphi 0, %s216
            %p213 = scmp.ge.s32.totalorder %s212, 8
          $region43: #{tpu_custom_call.1} parent=39 // loop_header_branch
            %215 = sbr.rel (%p213) target = $region47
          $region44: #{tpu_custom_call.1} parent=39 // loop_body
            %s217 = smul.u32 %s212, 8
            %s218 = sadd.s32 %s210, %s217
            %s219 = sld [smem:[#allocation6 + %s218]]
            %p220 = scmp.gt.s32.totalorder %s219, 0
            %s221 = scalar_select %p220, %s219, 0
            %p222 = scmp.lt.s32.totalorder %s221, 2047
            %s223 = scalar_select %p222, %s221, 2047
            %s224 = scalar_lea.vmem [#allocation7], %s223
            %v225 = vld [vmem:[%s224] sm:$0x1]
            %s226 = sadd.s32 %s218, 1
            %s227 = sld [smem:[#allocation6 + %s226]]
            %p228 = scmp.gt.s32.totalorder %s227, 0
            %s229 = scalar_select %p228, %s227, 0
            %p230 = scmp.lt.s32.totalorder %s229, 2047
            %s231 = scalar_select %p230, %s229, 2047
            %s232 = scalar_lea.vmem [#allocation7], %s231
            %v233 = vld [vmem:[%s232] sm:$0x1]
            %v234 = vadd.f32 %v225, %v233
            %s235 = sadd.s32 %s218, 2
            %s236 = sld [smem:[#allocation6 + %s235]]
            %p237 = scmp.gt.s32.totalorder %s236, 0
            %s238 = scalar_select %p237, %s236, 0
            %p239 = scmp.lt.s32.totalorder %s238, 2047
            %s240 = scalar_select %p239, %s238, 2047
            %s241 = scalar_lea.vmem [#allocation7], %s240
            %v242 = vld [vmem:[%s241] sm:$0x1]
            %v243 = vadd.f32 %v234, %v242
            %s244 = sadd.s32 %s218, 3
            %s245 = sld [smem:[#allocation6 + %s244]]
            %p246 = scmp.gt.s32.totalorder %s245, 0
            %s247 = scalar_select %p246, %s245, 0
            %p248 = scmp.lt.s32.totalorder %s247, 2047
            %s249 = scalar_select %p248, %s247, 2047
            %s250 = scalar_lea.vmem [#allocation7], %s249
            %v251 = vld [vmem:[%s250] sm:$0x1]
            %v252 = vadd.f32 %v243, %v251
            %s253 = sadd.s32 %s218, 4
            %s254 = sld [smem:[#allocation6 + %s253]]
            %p255 = scmp.gt.s32.totalorder %s254, 0
            %s256 = scalar_select %p255, %s254, 0
            %p257 = scmp.lt.s32.totalorder %s256, 2047
            %s258 = scalar_select %p257, %s256, 2047
            %s259 = scalar_lea.vmem [#allocation7], %s258
            %v260 = vld [vmem:[%s259] sm:$0x1]
            %v261 = vadd.f32 %v252, %v260
            %s262 = sadd.s32 %s218, 5
            %s263 = sld [smem:[#allocation6 + %s262]]
            %p264 = scmp.gt.s32.totalorder %s263, 0
            %s265 = scalar_select %p264, %s263, 0
            %p266 = scmp.lt.s32.totalorder %s265, 2047
            %s267 = scalar_select %p266, %s265, 2047
            %s268 = scalar_lea.vmem [#allocation7], %s267
            %v269 = vld [vmem:[%s268] sm:$0x1]
            %v270 = vadd.f32 %v261, %v269
            %s271 = sadd.s32 %s218, 6
            %s272 = sld [smem:[#allocation6 + %s271]]
            %p273 = scmp.gt.s32.totalorder %s272, 0
            %s274 = scalar_select %p273, %s272, 0
            %p275 = scmp.lt.s32.totalorder %s274, 2047
            %s276 = scalar_select %p275, %s274, 2047
            %s277 = scalar_lea.vmem [#allocation7], %s276
            %v278 = vld [vmem:[%s277] sm:$0x1]
            %v279 = vadd.f32 %v270, %v278
            %s280 = sadd.s32 %s218, 7
            %s281 = sld [smem:[#allocation6 + %s280]]
            %p282 = scmp.gt.s32.totalorder %s281, 0
            %s283 = scalar_select %p282, %s281, 0
            %p284 = scmp.lt.s32.totalorder %s283, 2047
            %s285 = scalar_select %p284, %s283, 2047
            %s286 = scalar_lea.vmem [#allocation7], %s285
            %v287 = vld [vmem:[%s286] sm:$0x1]
            %v288 = vadd.f32 %v279, %v287
            %v289 = vmul.f32 %v288, 0.125
            %s290 = scalar_lea.vmem [#allocation2], %s212
            %291 = vst [vmem:[%s290] sm:$0x1] %v289
          $region45: #{tpu_custom_call.1} parent=39 // loop_footer
            %s216 = sadd.s32 1, %s212
          $region46: #{tpu_custom_call.1} parent=39 // loop_footer_branch
            %211 = sbr.rel target = $region42
          $region47: #{tpu_custom_call.1} parent=39 // loop_exit
            _
        $region40: #{tpu_custom_call.1} parent=27 // pred_fallthru
          _
        %v292 = vld [vmem:[#allocation2] sm:$0xff]
        %v293 = vld [vmem:[%s180] sm:$0xff]
        %v294 = vld [vmem:[%s180 + $0x8] sm:$0xff]
        %v295 = vld [vmem:[%s180 + $0x10] sm:$0xff]
        %v296 = vld [vmem:[%s180 + $0x18] sm:$0xff]
        %v297 = vld [vmem:[%s180 + $0x20] sm:$0xff]
        %v298 = vld [vmem:[%s180 + $0x28] sm:$0xff]
        %v299 = vld [vmem:[%s180 + $0x30] sm:$0xff]
        %v300 = vld [vmem:[%s180 + $0x38] sm:$0xff]
        %v301 = vld [vmem:[%s180 + $0x40] sm:$0xff]
        %v302 = vld [vmem:[%s180 + $0x48] sm:$0xff]
        %v303 = vld [vmem:[%s180 + $0x50] sm:$0xff]
        %v304 = vld [vmem:[%s180 + $0x58] sm:$0xff]
        %v305 = vld [vmem:[%s180 + $0x60] sm:$0xff]
        %v306 = vld [vmem:[%s180 + $0x68] sm:$0xff]
        %v307 = vld [vmem:[%s180 + $0x70] sm:$0xff]
        %v308 = vld [vmem:[%s180 + $0x78] sm:$0xff]
        %v309 = vld [vmem:[%s180 + $0x80] sm:$0xff]
        %v310 = vld [vmem:[%s180 + $0x88] sm:$0xff]
        %v311 = vld [vmem:[%s180 + $0x90] sm:$0xff]
        %v312 = vld [vmem:[%s180 + $0x98] sm:$0xff]
        %v313 = vld [vmem:[%s180 + $0xa0] sm:$0xff]
        %v314 = vld [vmem:[%s180 + $0xa8] sm:$0xff]
        %v315 = vld [vmem:[%s180 + $0xb0] sm:$0xff]
        %v316 = vld [vmem:[%s180 + $0xb8] sm:$0xff]
        %v317 = vld [vmem:[%s180 + $0xc0] sm:$0xff]
        %v318 = vld [vmem:[%s180 + $0xc8] sm:$0xff]
        %v319 = vld [vmem:[%s180 + $0xd0] sm:$0xff]
        %v320 = vld [vmem:[%s180 + $0xd8] sm:$0xff]
        %v321 = vld [vmem:[%s180 + $0xe0] sm:$0xff]
        %v322 = vld [vmem:[%s180 + $0xe8] sm:$0xff]
        %v323 = vld [vmem:[%s180 + $0xf0] sm:$0xff]
        %v324 = vld [vmem:[%s180 + $0xf8] sm:$0xff]
        %v325 = vld [vmem:[%s180 + $0x100] sm:$0xff]
        %v326 = vld [vmem:[%s180 + $0x108] sm:$0xff]
        %v327 = vld [vmem:[%s180 + $0x110] sm:$0xff]
        %v328 = vld [vmem:[%s180 + $0x118] sm:$0xff]
        %v329 = vld [vmem:[%s180 + $0x120] sm:$0xff]
        %v330 = vld [vmem:[%s180 + $0x128] sm:$0xff]
        %v331 = vld [vmem:[%s180 + $0x130] sm:$0xff]
        %v332 = vld [vmem:[%s180 + $0x138] sm:$0xff]
        %v333 = vld [vmem:[%s180 + $0x140] sm:$0xff]
        %v334 = vld [vmem:[%s180 + $0x148] sm:$0xff]
        %v335 = vld [vmem:[%s180 + $0x150] sm:$0xff]
        %v336 = vld [vmem:[%s180 + $0x158] sm:$0xff]
        %v337 = vld [vmem:[%s180 + $0x160] sm:$0xff]
        %v338 = vld [vmem:[%s180 + $0x168] sm:$0xff]
        %v339 = vld [vmem:[%s180 + $0x170] sm:$0xff]
        %v340 = vld [vmem:[%s180 + $0x178] sm:$0xff]
        %v341 = vld [vmem:[%s180 + $0x180] sm:$0xff]
        %v342 = vld [vmem:[%s180 + $0x188] sm:$0xff]
        %v343 = vld [vmem:[%s180 + $0x190] sm:$0xff]
        %v344 = vld [vmem:[%s180 + $0x198] sm:$0xff]
        %v345 = vld [vmem:[%s180 + $0x1a0] sm:$0xff]
        %v346 = vld [vmem:[%s180 + $0x1a8] sm:$0xff]
        %v347 = vld [vmem:[%s180 + $0x1b0] sm:$0xff]
        %v348 = vld [vmem:[%s180 + $0x1b8] sm:$0xff]
        %v349 = vld [vmem:[%s180 + $0x1c0] sm:$0xff]
        %v350 = vld [vmem:[%s180 + $0x1c8] sm:$0xff]
        %v351 = vld [vmem:[%s180 + $0x1d0] sm:$0xff]
        %v352 = vld [vmem:[%s180 + $0x1d8] sm:$0xff]
        %v353 = vld [vmem:[%s180 + $0x1e0] sm:$0xff]
        %v354 = vld [vmem:[%s180 + $0x1e8] sm:$0xff]
        %v355 = vld [vmem:[%s180 + $0x1f0] sm:$0xff]
        %v356 = vld [vmem:[%s180 + $0x1f8] sm:$0xff]
        %v357 = vld [vmem:[%s180 + $0x200] sm:$0xff]
        %v358 = vld [vmem:[%s180 + $0x208] sm:$0xff]
        %v359 = vld [vmem:[%s180 + $0x210] sm:$0xff]
        %v360 = vld [vmem:[%s180 + $0x218] sm:$0xff]
        %v361 = vld [vmem:[%s180 + $0x220] sm:$0xff]
        %v362 = vld [vmem:[%s180 + $0x228] sm:$0xff]
        %v363 = vld [vmem:[%s180 + $0x230] sm:$0xff]
        %v364 = vld [vmem:[%s180 + $0x238] sm:$0xff]
        %v365 = vld [vmem:[%s180 + $0x240] sm:$0xff]
        %v366 = vld [vmem:[%s180 + $0x248] sm:$0xff]
        %v367 = vld [vmem:[%s180 + $0x250] sm:$0xff]
        %v368 = vld [vmem:[%s180 + $0x258] sm:$0xff]
        %v369 = vld [vmem:[%s180 + $0x260] sm:$0xff]
        %v370 = vld [vmem:[%s180 + $0x268] sm:$0xff]
        %v371 = vld [vmem:[%s180 + $0x270] sm:$0xff]
        %v372 = vld [vmem:[%s180 + $0x278] sm:$0xff]
        %v373 = vld [vmem:[%s180 + $0x280] sm:$0xff]
        %v374 = vld [vmem:[%s180 + $0x288] sm:$0xff]
        %v375 = vld [vmem:[%s180 + $0x290] sm:$0xff]
        %v376 = vld [vmem:[%s180 + $0x298] sm:$0xff]
        %v377 = vld [vmem:[%s180 + $0x2a0] sm:$0xff]
        %v378 = vld [vmem:[%s180 + $0x2a8] sm:$0xff]
        %v379 = vld [vmem:[%s180 + $0x2b0] sm:$0xff]
        %v380 = vld [vmem:[%s180 + $0x2b8] sm:$0xff]
        %v381 = vld [vmem:[%s180 + $0x2c0] sm:$0xff]
        %v382 = vld [vmem:[%s180 + $0x2c8] sm:$0xff]
        %v383 = vld [vmem:[%s180 + $0x2d0] sm:$0xff]
        %v384 = vld [vmem:[%s180 + $0x2d8] sm:$0xff]
        %v385 = vld [vmem:[%s180 + $0x2e0] sm:$0xff]
        %v386 = vld [vmem:[%s180 + $0x2e8] sm:$0xff]
        %v387 = vld [vmem:[%s180 + $0x2f0] sm:$0xff]
        %v388 = vld [vmem:[%s180 + $0x2f8] sm:$0xff]
        %v389 = vld [vmem:[%s180 + $0x300] sm:$0xff]
        %v390 = vld [vmem:[%s180 + $0x308] sm:$0xff]
        %v391 = vld [vmem:[%s180 + $0x310] sm:$0xff]
        %v392 = vld [vmem:[%s180 + $0x318] sm:$0xff]
        %v393 = vld [vmem:[%s180 + $0x320] sm:$0xff]
        %v394 = vld [vmem:[%s180 + $0x328] sm:$0xff]
        %v395 = vld [vmem:[%s180 + $0x330] sm:$0xff]
        %v396 = vld [vmem:[%s180 + $0x338] sm:$0xff]
        %v397 = vld [vmem:[%s180 + $0x340] sm:$0xff]
        %v398 = vld [vmem:[%s180 + $0x348] sm:$0xff]
        %v399 = vld [vmem:[%s180 + $0x350] sm:$0xff]
        %v400 = vld [vmem:[%s180 + $0x358] sm:$0xff]
        %v401 = vld [vmem:[%s180 + $0x360] sm:$0xff]
        %v402 = vld [vmem:[%s180 + $0x368] sm:$0xff]
        %v403 = vld [vmem:[%s180 + $0x370] sm:$0xff]
        %v404 = vld [vmem:[%s180 + $0x378] sm:$0xff]
        %v405 = vld [vmem:[%s180 + $0x380] sm:$0xff]
        %v406 = vld [vmem:[%s180 + $0x388] sm:$0xff]
        %v407 = vld [vmem:[%s180 + $0x390] sm:$0xff]
        %v408 = vld [vmem:[%s180 + $0x398] sm:$0xff]
        %v409 = vld [vmem:[%s180 + $0x3a0] sm:$0xff]
        %v410 = vld [vmem:[%s180 + $0x3a8] sm:$0xff]
        %v411 = vld [vmem:[%s180 + $0x3b0] sm:$0xff]
        %v412 = vld [vmem:[%s180 + $0x3b8] sm:$0xff]
        %v413 = vld [vmem:[%s180 + $0x3c0] sm:$0xff]
        %v414 = vld [vmem:[%s180 + $0x3c8] sm:$0xff]
        %v415 = vld [vmem:[%s180 + $0x3d0] sm:$0xff]
        %v416 = vld [vmem:[%s180 + $0x3d8] sm:$0xff]
        %v417 = vld [vmem:[%s180 + $0x3e0] sm:$0xff]
        %v418 = vld [vmem:[%s180 + $0x3e8] sm:$0xff]
        %v419 = vld [vmem:[%s180 + $0x3f0] sm:$0xff]
        %v420 = vld [vmem:[%s180 + $0x3f8] sm:$0xff]
        %421 = vmatpush.xpose.msra.mxu0 %v308
        %422 = vmatpush.xpose.msra.mxu0 %v307
        %423 = vmatpush.xpose.msra.mxu0 %v306
        %424 = vmatpush.xpose.msra.mxu0 %v305
        %425 = vmatpush.xpose.msra.mxu0 %v304
        %426 = vmatpush.xpose.msra.mxu0 %v303
        %427 = vmatpush.xpose.msra.mxu0 %v302
        %428 = vmatpush.xpose.msra.mxu0 %v301
        %429 = vmatpush.xpose.msra.mxu0 %v300
        %430 = vmatpush.xpose.msra.mxu0 %v299
        %431 = vmatpush.xpose.msra.mxu0 %v298
        %432 = vmatpush.xpose.msra.mxu0 %v297
        %433 = vmatpush.xpose.msra.mxu0 %v296
        %434 = vmatpush.xpose.msra.mxu0 %v295
        %435 = vmatpush.xpose.msra.mxu0 %v294
        %436 = vmatpush.xpose.msra.mxu0 %v293
        %437 = vmatmul.f32.gmra.mxu0 %v292
        %v438 = vpop.f32.mrf.mxu0
        %v439 = vadd.f32 0.0, %v438
        %440 = vdwg.mxu0
        %441 = vmatpush.xpose.msra.mxu0 %v324
        %442 = vmatpush.xpose.msra.mxu0 %v323
        %443 = vmatpush.xpose.msra.mxu0 %v322
        %444 = vmatpush.xpose.msra.mxu0 %v321
        %445 = vmatpush.xpose.msra.mxu0 %v320
        %446 = vmatpush.xpose.msra.mxu0 %v319
        %447 = vmatpush.xpose.msra.mxu0 %v318
        %448 = vmatpush.xpose.msra.mxu0 %v317
        %449 = vmatpush.xpose.msra.mxu0 %v316
        %450 = vmatpush.xpose.msra.mxu0 %v315
        %451 = vmatpush.xpose.msra.mxu0 %v314
        %452 = vmatpush.xpose.msra.mxu0 %v313
        %453 = vmatpush.xpose.msra.mxu0 %v312
        %454 = vmatpush.xpose.msra.mxu0 %v311
        %455 = vmatpush.xpose.msra.mxu0 %v310
        %456 = vmatpush.xpose.msra.mxu0 %v309
        %457 = vmatmul.f32.gmra.mxu0 %v292
        %v458 = vpop.f32.mrf.mxu0
        %v459 = vadd.f32 0.0, %v458
        %460 = vdwg.mxu0
        %461 = vmatpush.xpose.msra.mxu0 %v340
        %462 = vmatpush.xpose.msra.mxu0 %v339
        %463 = vmatpush.xpose.msra.mxu0 %v338
        %464 = vmatpush.xpose.msra.mxu0 %v337
        %465 = vmatpush.xpose.msra.mxu0 %v336
        %466 = vmatpush.xpose.msra.mxu0 %v335
        %467 = vmatpush.xpose.msra.mxu0 %v334
        %468 = vmatpush.xpose.msra.mxu0 %v333
        %469 = vmatpush.xpose.msra.mxu0 %v332
        %470 = vmatpush.xpose.msra.mxu0 %v331
        %471 = vmatpush.xpose.msra.mxu0 %v330
        %472 = vmatpush.xpose.msra.mxu0 %v329
        %473 = vmatpush.xpose.msra.mxu0 %v328
        %474 = vmatpush.xpose.msra.mxu0 %v327
        %475 = vmatpush.xpose.msra.mxu0 %v326
        %476 = vmatpush.xpose.msra.mxu0 %v325
        %477 = vmatmul.f32.gmra.mxu0 %v292
        %v478 = vpop.f32.mrf.mxu0
        %v479 = vadd.f32 0.0, %v478
        %480 = vdwg.mxu0
        %481 = vmatpush.xpose.msra.mxu0 %v356
        %482 = vmatpush.xpose.msra.mxu0 %v355
        %483 = vmatpush.xpose.msra.mxu0 %v354
        %484 = vmatpush.xpose.msra.mxu0 %v353
        %485 = vmatpush.xpose.msra.mxu0 %v352
        %486 = vmatpush.xpose.msra.mxu0 %v351
        %487 = vmatpush.xpose.msra.mxu0 %v350
        %488 = vmatpush.xpose.msra.mxu0 %v349
        %489 = vmatpush.xpose.msra.mxu0 %v348
        %490 = vmatpush.xpose.msra.mxu0 %v347
        %491 = vmatpush.xpose.msra.mxu0 %v346
        %492 = vmatpush.xpose.msra.mxu0 %v345
        %493 = vmatpush.xpose.msra.mxu0 %v344
        %494 = vmatpush.xpose.msra.mxu0 %v343
        %495 = vmatpush.xpose.msra.mxu0 %v342
        %496 = vmatpush.xpose.msra.mxu0 %v341
        %497 = vmatmul.f32.gmra.mxu0 %v292
        %v498 = vpop.f32.mrf.mxu0
        %v499 = vadd.f32 0.0, %v498
        %500 = vdwg.mxu0
        %501 = vmatpush.xpose.msra.mxu0 %v372
        %502 = vmatpush.xpose.msra.mxu0 %v371
        %503 = vmatpush.xpose.msra.mxu0 %v370
        %504 = vmatpush.xpose.msra.mxu0 %v369
        %505 = vmatpush.xpose.msra.mxu0 %v368
        %506 = vmatpush.xpose.msra.mxu0 %v367
        %507 = vmatpush.xpose.msra.mxu0 %v366
        %508 = vmatpush.xpose.msra.mxu0 %v365
        %509 = vmatpush.xpose.msra.mxu0 %v364
        %510 = vmatpush.xpose.msra.mxu0 %v363
        %511 = vmatpush.xpose.msra.mxu0 %v362
        %512 = vmatpush.xpose.msra.mxu0 %v361
        %513 = vmatpush.xpose.msra.mxu0 %v360
        %514 = vmatpush.xpose.msra.mxu0 %v359
        %515 = vmatpush.xpose.msra.mxu0 %v358
        %516 = vmatpush.xpose.msra.mxu0 %v357
        %517 = vmatmul.f32.gmra.mxu0 %v292
        %v518 = vpop.f32.mrf.mxu0
        %v519 = vadd.f32 0.0, %v518
        %520 = vdwg.mxu0
        %521 = vmatpush.xpose.msra.mxu0 %v388
        %522 = vmatpush.xpose.msra.mxu0 %v387
        %523 = vmatpush.xpose.msra.mxu0 %v386
        %524 = vmatpush.xpose.msra.mxu0 %v385
        %525 = vmatpush.xpose.msra.mxu0 %v384
        %526 = vmatpush.xpose.msra.mxu0 %v383
        %527 = vmatpush.xpose.msra.mxu0 %v382
        %528 = vmatpush.xpose.msra.mxu0 %v381
        %529 = vmatpush.xpose.msra.mxu0 %v380
        %530 = vmatpush.xpose.msra.mxu0 %v379
        %531 = vmatpush.xpose.msra.mxu0 %v378
        %532 = vmatpush.xpose.msra.mxu0 %v377
        %533 = vmatpush.xpose.msra.mxu0 %v376
        %534 = vmatpush.xpose.msra.mxu0 %v375
        %535 = vmatpush.xpose.msra.mxu0 %v374
        %536 = vmatpush.xpose.msra.mxu0 %v373
        %537 = vmatmul.f32.gmra.mxu0 %v292
        %v538 = vpop.f32.mrf.mxu0
        %v539 = vadd.f32 0.0, %v538
        %540 = vdwg.mxu0
        %541 = vmatpush.xpose.msra.mxu0 %v404
        %542 = vmatpush.xpose.msra.mxu0 %v403
        %543 = vmatpush.xpose.msra.mxu0 %v402
        %544 = vmatpush.xpose.msra.mxu0 %v401
        %545 = vmatpush.xpose.msra.mxu0 %v400
        %546 = vmatpush.xpose.msra.mxu0 %v399
        %547 = vmatpush.xpose.msra.mxu0 %v398
        %548 = vmatpush.xpose.msra.mxu0 %v397
        %549 = vmatpush.xpose.msra.mxu0 %v396
        %550 = vmatpush.xpose.msra.mxu0 %v395
        %551 = vmatpush.xpose.msra.mxu0 %v394
        %552 = vmatpush.xpose.msra.mxu0 %v393
        %553 = vmatpush.xpose.msra.mxu0 %v392
        %554 = vmatpush.xpose.msra.mxu0 %v391
        %555 = vmatpush.xpose.msra.mxu0 %v390
        %556 = vmatpush.xpose.msra.mxu0 %v389
        %557 = vmatmul.f32.gmra.mxu0 %v292
        %v558 = vpop.f32.mrf.mxu0
        %v559 = vadd.f32 0.0, %v558
        %560 = vdwg.mxu0
        %561 = vmatpush.xpose.msra.mxu0 %v420
        %562 = vmatpush.xpose.msra.mxu0 %v419
        %563 = vmatpush.xpose.msra.mxu0 %v418
        %564 = vmatpush.xpose.msra.mxu0 %v417
        %565 = vmatpush.xpose.msra.mxu0 %v416
        %566 = vmatpush.xpose.msra.mxu0 %v415
        %567 = vmatpush.xpose.msra.mxu0 %v414
        %568 = vmatpush.xpose.msra.mxu0 %v413
        %569 = vmatpush.xpose.msra.mxu0 %v412
        %570 = vmatpush.xpose.msra.mxu0 %v411
        %571 = vmatpush.xpose.msra.mxu0 %v410
        %572 = vmatpush.xpose.msra.mxu0 %v409
        %573 = vmatpush.xpose.msra.mxu0 %v408
        %574 = vmatpush.xpose.msra.mxu0 %v407
        %575 = vmatpush.xpose.msra.mxu0 %v406
        %576 = vmatpush.xpose.msra.mxu0 %v405
        %577 = vmatmul.f32.gmra.mxu0 %v292
        %v578 = vpop.f32.mrf.mxu0
        %v579 = vadd.f32 0.0, %v578
        %580 = vdwg.mxu0
        // Predicated region
        $region48: #{tpu_custom_call.1} parent=27 // pred_check
          %p581 = pneg %p203
        $region49: #{tpu_custom_call.1} parent=27 // pred_check_branch
          %583 = sbr.rel (%p581) target = $region51
        $region50: #{tpu_custom_call.1} parent=27 // pred_region
          %584 = vst [vmem:[%s201] sm:$0xff] %v439
          %585 = vst [vmem:[%s201 + $0x8] sm:$0xff] %v459
          %586 = vst [vmem:[%s201 + $0x10] sm:$0xff] %v479
          %587 = vst [vmem:[%s201 + $0x18] sm:$0xff] %v499
          %588 = vst [vmem:[%s201 + $0x20] sm:$0xff] %v519
          %589 = vst [vmem:[%s201 + $0x28] sm:$0xff] %v539
          %590 = vst [vmem:[%s201 + $0x30] sm:$0xff] %v559
          %591 = vst [vmem:[%s201 + $0x38] sm:$0xff] %v579
        $region51: #{tpu_custom_call.1} parent=27 // pred_fallthru
          _
        %p592 = scmp.eq.s32.totalorder %s34, 1
        // Predicated region
        $region52: #{tpu_custom_call.1} parent=27 // pred_check
          %p593 = pneg %p592
        $region53: #{tpu_custom_call.1} parent=27 // pred_check_branch
          %595 = sbr.rel (%p593) target = $region55
        $region54: #{tpu_custom_call.1} parent=27 // pred_region
          %596 = vst [vmem:[%s201 + $0x40] sm:$0xff] %v439
          %597 = vst [vmem:[%s201 + $0x48] sm:$0xff] %v459
          %598 = vst [vmem:[%s201 + $0x50] sm:$0xff] %v479
          %599 = vst [vmem:[%s201 + $0x58] sm:$0xff] %v499
          %600 = vst [vmem:[%s201 + $0x60] sm:$0xff] %v519
          %601 = vst [vmem:[%s201 + $0x68] sm:$0xff] %v539
          %602 = vst [vmem:[%s201 + $0x70] sm:$0xff] %v559
          %603 = vst [vmem:[%s201 + $0x78] sm:$0xff] %v579
        $region55: #{tpu_custom_call.1} parent=27 // pred_fallthru
          _
        %v604 = vld [vmem:[#allocation3] sm:$0xff]
        %v605 = vmax.f32 %v439, %v519
        %v606 = vmax.f32 %v459, %v539
        %v607 = vmax.f32 %v479, %v559
        %v608 = vmax.f32 %v499, %v579
        %v609 = vmax.f32 %v605, %v606
        %v610 = vmax.f32 %v607, %v608
        %v611 = vmax.f32 %v609, %v610
        %612 = vmax.xlane.f32.xlu0 %v611
        %v613 = vpop.xlane.xlu0 %612
        %v614 = vmax.f32 %v604, %v613
        %v615 = vld [vmem:[#allocation4] sm:$0xff]
        %v616 = vsub.f32 %v604, %v614
        %v617 = vmul.f32 %v616, 1.442695
        %v618 = vpow.pop %v617
        %v619 = vmul.f32 %v615, %v618
        %621 = vset.pattern.permute.xlu0 0
        %622 = vperm.xlu0 %621, %v614
        %v623 = vpop.permute.xlu0 %622
        %v625 = vsub.f32 %v439, %v623
        %v626 = vsub.f32 %v459, %v623
        %v627 = vsub.f32 %v479, %v623
        %v628 = vsub.f32 %v499, %v623
        %v629 = vsub.f32 %v519, %v623
        %v630 = vsub.f32 %v539, %v623
        %v631 = vsub.f32 %v559, %v623
        %v632 = vsub.f32 %v579, %v623
        %v633 = vmul.f32 %v625, 1.442695
        %v634 = vpow.pop %v633
        %v635 = vmul.f32 %v626, 1.442695
        %v636 = vpow.pop %v635
        %v637 = vmul.f32 %v627, 1.442695
        %v638 = vpow.pop %v637
        %v639 = vmul.f32 %v628, 1.442695
        %v640 = vpow.pop %v639
        %v641 = vmul.f32 %v629, 1.442695
        %v642 = vpow.pop %v641
        %v643 = vmul.f32 %v630, 1.442695
        %v644 = vpow.pop %v643
        %v645 = vmul.f32 %v631, 1.442695
        %v646 = vpow.pop %v645
        %v647 = vmul.f32 %v632, 1.442695
        %v648 = vpow.pop %v647
        %v649 = vadd.f32 %v634, %v636
        %v650 = vadd.f32 %v649, %v638
        %v651 = vadd.f32 %v650, %v640
        %v652 = vadd.f32 %v651, %v642
        %v653 = vadd.f32 %v652, %v644
        %v654 = vadd.f32 %v653, %v646
        %v655 = vadd.f32 %v654, %v648
        %656 = vadd.xlane.f32.xlu0 %v655
        %v657 = vpop.xlane.xlu0 %656
        %v658 = vadd.f32 %v619, %v657
        %vm659 = vcmask 7168
        %660 = vst.msk [vmem:[#allocation4] sm:$0xff] %vm659, %v658
        %661 = vst.msk [vmem:[#allocation3] sm:$0xff] %vm659, %v614
        // Predicated region
        $region56: #{tpu_custom_call.1} parent=27 // pred_check
          %p662 = pneg %p592
        $region57: #{tpu_custom_call.1} parent=27 // pred_check_branch
          %664 = sbr.rel (%p662) target = $region59
        $region58: #{tpu_custom_call.1} parent=27 // pred_region
          %v665 = vld [vmem:[#allocation3] sm:$0xff]
          %v666 = vld [vmem:[#allocation4] sm:$0xff]
          %v667 = vlog2.pop %v666
          %v668 = vmul.f32 %v667, 0.6931472
          %v669 = vadd.f32 %v665, %v668
          %v670 = vld [vmem:[%s201] sm:$0xff]
          %v671 = vld [vmem:[%s201 + $0x8] sm:$0xff]
          %v672 = vld [vmem:[%s201 + $0x10] sm:$0xff]
          %v673 = vld [vmem:[%s201 + $0x18] sm:$0xff]
          %v674 = vld [vmem:[%s201 + $0x20] sm:$0xff]
          %v675 = vld [vmem:[%s201 + $0x28] sm:$0xff]
          %v676 = vld [vmem:[%s201 + $0x30] sm:$0xff]
          %v677 = vld [vmem:[%s201 + $0x38] sm:$0xff]
          %679 = vset.pattern.permute.xlu0 0
          %680 = vperm.xlu0 %679, %v669
          %v681 = vpop.permute.xlu0 %680
          %v683 = vsub.f32 %v670, %v681
          %v684 = vsub.f32 %v671, %v681
          %v685 = vsub.f32 %v672, %v681
          %v686 = vsub.f32 %v673, %v681
          %v687 = vsub.f32 %v674, %v681
          %v688 = vsub.f32 %v675, %v681
          %v689 = vsub.f32 %v676, %v681
          %v690 = vsub.f32 %v677, %v681
          %691 = vst [vmem:[%s201] sm:$0xff] %v683
          %692 = vst [vmem:[%s201 + $0x8] sm:$0xff] %v684
          %693 = vst [vmem:[%s201 + $0x10] sm:$0xff] %v685
          %694 = vst [vmem:[%s201 + $0x18] sm:$0xff] %v686
          %695 = vst [vmem:[%s201 + $0x20] sm:$0xff] %v687
          %696 = vst [vmem:[%s201 + $0x28] sm:$0xff] %v688
          %697 = vst [vmem:[%s201 + $0x30] sm:$0xff] %v689
          %698 = vst [vmem:[%s201 + $0x38] sm:$0xff] %v690
          %v699 = vld [vmem:[%s201 + $0x40] sm:$0xff]
          %v700 = vld [vmem:[%s201 + $0x48] sm:$0xff]
          %v701 = vld [vmem:[%s201 + $0x50] sm:$0xff]
          %v702 = vld [vmem:[%s201 + $0x58] sm:$0xff]
          %v703 = vld [vmem:[%s201 + $0x60] sm:$0xff]
          %v704 = vld [vmem:[%s201 + $0x68] sm:$0xff]
          %v705 = vld [vmem:[%s201 + $0x70] sm:$0xff]
          %v706 = vld [vmem:[%s201 + $0x78] sm:$0xff]
          %v707 = vsub.f32 %v699, %v681
          %v708 = vsub.f32 %v700, %v681
          %v709 = vsub.f32 %v701, %v681
          %v710 = vsub.f32 %v702, %v681
          %v711 = vsub.f32 %v703, %v681
          %v712 = vsub.f32 %v704, %v681
          %v713 = vsub.f32 %v705, %v681
          %v714 = vsub.f32 %v706, %v681
          %715 = vst [vmem:[%s201 + $0x40] sm:$0xff] %v707
          %716 = vst [vmem:[%s201 + $0x48] sm:$0xff] %v708
          %717 = vst [vmem:[%s201 + $0x50] sm:$0xff] %v709
          %718 = vst [vmem:[%s201 + $0x58] sm:$0xff] %v710
          %719 = vst [vmem:[%s201 + $0x60] sm:$0xff] %v711
          %720 = vst [vmem:[%s201 + $0x68] sm:$0xff] %v712
          %721 = vst [vmem:[%s201 + $0x70] sm:$0xff] %v713
          %722 = vst [vmem:[%s201 + $0x78] sm:$0xff] %v714
        $region59: #{tpu_custom_call.1} parent=27 // pred_fallthru
          _
        %s723 = sand.u32 %s96, 1
        %s724 = scalar_lea.sflag [#allocation9], %s723
        %s725 = sand.u32 %s96, 1
        %s726 = smul.addr %s725, 128
        %s727 = scalar_lea.vmem [#allocation12], %s726
        // Predicated region
        $region60: #{tpu_custom_call.1} parent=27 // pred_check
          %p728 = pneg %p106
        $region61: #{tpu_custom_call.1} parent=27 // pred_check_branch
          %730 = sbr.rel (%p728) target = $region63
        $region62: #{tpu_custom_call.1} parent=27 // pred_region
          %732 = vsyncadd %s724, 0
          %s733 = smul.addr %s33, 16
          %s734 = smul.addr %s733, 8
          %s735 = scalar_lea.hbm %s3, %s734
          %s737 = sshll.u32 %s727, 4
          %s738 = int_to_ptr.vmem [resolvable:$true] %s737
          %s739 = sshll.u32 %s735, 4
          %s740 = int_to_ptr.hbm [resolvable:$true] %s739
          %742 = dma.vmem_to_hbm [thread:$0]  %s738, 2048, %s740, %s724
        $region63: #{tpu_custom_call.1} parent=27 // pred_fallthru
          _
      $region28: #{tpu_custom_call.1} parent=5 // pred_fallthru
        _
      %p743 = scmp.le.s32.totalorder 2, %s24
      // Predicated region
      $region64: #{tpu_custom_call.1} parent=5 // pred_check
        %p744 = pneg %p743
      $region65: #{tpu_custom_call.1} parent=5 // pred_check_branch
        %746 = sbr.rel (%p744) target = $region67
      $region66: #{tpu_custom_call.1} parent=5 // pred_region
        %s747 = ssub.s32 %s24, 2
        // Predicated region
        $region68: #{tpu_custom_call.1} parent=66 // pred_check
          %p748 = pneg %p112
        $region69: #{tpu_custom_call.1} parent=66 // pred_check_branch
          %750 = sbr.rel (%p748) target = $region71
        $region70: #{tpu_custom_call.1} parent=66 // pred_region
          %s751 = sand.u32 %s97, 1
          %s752 = scalar_lea.sflag [#allocation9], %s751
          %s753 = sand.u32 %s97, 1
          %s754 = smul.addr %s753, 128
          %s755 = scalar_lea.vmem [#allocation12], %s754
          %757 = dma.done %s752, 2048
        $region71: #{tpu_custom_call.1} parent=66 // pred_fallthru
          _
      $region67: #{tpu_custom_call.1} parent=5 // pred_fallthru
        _
    $region6: #{tpu_custom_call.1} parent=1 // loop_footer
      %s28 = sadd.s32 1, %s24
    $region7: #{tpu_custom_call.1} parent=1 // loop_footer_branch
      %23 = sbr.rel target = $region3
    $region8: #{tpu_custom_call.1} parent=1 // loop_exit
      _
    %758 = vsyncpa [#allocation8], 1
    %s759 = scalar_lea.sflag [#allocation8], 1
    %760 = vsyncpa %s759, 1
    %761 = vsyncpa [#allocation11], 1
    %s762 = scalar_lea.sflag [#allocation11], 1
    %763 = vsyncpa %s762, 1
    %764 = vsyncpa [#allocation9], 1
    %s765 = scalar_lea.sflag [#allocation9], 1
    %766 = vsyncpa %s765, 1

</llo_original>
